<compile_context>
chip_gen: v7x
topology: tpu7x:2x2x1
jax: 0.10.0
libtpu: 0.0.40
codegen_flags: <defaults>
</compile_context>

<pallas_src>
import jax
import jax.numpy as jnp
from jax.experimental import pallas as pl
from jax.experimental.pallas import tpu as pltpu


def _round_up(x, m):
    return ((x + m - 1) // m) * m


def _cdiv(a, b):
    return (a + b - 1) // b


def _tpu_vmem_and_cores():
    """Best-effort query of per-core VMEM capacity and TensorCore count."""
    vmem = 128 << 20
    cores = 1
    try:
        info = pltpu.get_tpu_info()
        v = getattr(info, "vmem_capacity_bytes", None)
        if isinstance(v, int) and v > 0:
            vmem = v
        for name in ("num_tensorcores", "tensor_cores_per_chip", "num_cores",
                     "cores_per_chip"):
            c = getattr(info, name, None)
            if isinstance(c, int) and c > 0:
                cores = c
                break
    except Exception:
        pass
    return vmem, cores


def qwen3_mlp_kernel(x_ref, wg_ref, wu_ref, wd_ref, o_ref, acc_ref):
    """One grid step (i, j, k).

    x_ref  : (tm, H)       row tile of x
    wg_ref : (H, ti)       gate_proj slab for intermediate block k
    wu_ref : (H, ti)       up_proj slab for intermediate block k
    wd_ref : (ti, th)      down_proj slab for (intermediate k, hidden j)
    o_ref  : (tm, th)      output tile (written on the last k step)
    acc_ref: (tm, th) f32  VMEM accumulator, persistent across the k axis
    """
    k = pl.program_id(2)

    @pl.when(k == 0)
    def _():
        acc_ref[...] = jnp.zeros_like(acc_ref)

    x = x_ref[...]
    gate = jnp.dot(x, wg_ref[...], preferred_element_type=jnp.float32)
    up = jnp.dot(x, wu_ref[...], preferred_element_type=jnp.float32)

    # SiLU(gate) * up in f32 (sigmoid goes to the EUP).
    h = (gate * jax.nn.sigmoid(gate)) * up

    # Partial down_proj, accumulated in f32 across the k (reduction) axis.
    acc_ref[...] += jnp.dot(h.astype(wd_ref.dtype), wd_ref[...],
                            preferred_element_type=jnp.float32)

    @pl.when(k == pl.num_programs(2) - 1)
    def _():
        o_ref[...] = acc_ref[...].astype(o_ref.dtype)


def qwen3_mlp(x, wg, wu, wd, *, tm=None, ti=None, th=None):
    """x: [B, S, H]; wg/wu: [H, I]; wd: [I, H]  ->  [B, S, H]."""
    B, S, H = x.shape
    Hw, I = wg.shape
    assert Hw == H and wu.shape == (H, I) and wd.shape == (I, H)
    assert H % 128 == 0 and I % 128 == 0, "H and I must be lane-aligned (x128)"

    M = B * S
    in_elt = jnp.dtype(x.dtype).itemsize
    out_elt = in_elt
    sub = {1: 32, 2: 16}.get(in_elt, 8)          # dtype-aware sublane multiple

    vmem_cap, n_cores = _tpu_vmem_and_cores()
    small_vmem = vmem_cap <= (64 << 20) + (1 << 20)    # v7x-class (64 MiB)

    # --- generation-aware default tiles
    if tm is None:
        tm = 384 if small_vmem else 512
    if ti is None:
        ti = 256 if small_vmem else 512

    # --- balanced row tiling (padding bounded by ~one sublane group per tile)
    tm_max = max(sub, _round_up(tm, sub))
    n_m = _cdiv(M, tm_max)
    tm = _round_up(_cdiv(M, n_m), sub)
    M_pad = n_m * tm

    # --- intermediate tile: lane-aligned and dividing I
    ti = min(max(128, (ti // 128) * 128), I)
    while I % ti != 0:
        ti -= 128

    # --- output-H tile: split only for decode-sized M on multi-TC chips
    if th is None:
        if n_m == 1 and n_cores > 1 and H % (128 * n_cores) == 0:
            th = H // n_cores
        else:
            th = H
    th = min(max(128, (th // 128) * 128), H)
    while H % th != 0:
        th -= 128
    n_h = H // th

    # --- VMEM estimate incl. double-buffers, f32 accumulator and temporaries
    def est(tm_, ti_, th_):
        dbl_in = 2 * (tm_ * H + 2 * H * ti_ + ti_ * th_) * in_elt
        dbl_out = 2 * tm_ * th_ * out_elt
        acc = tm_ * th_ * 4
        temps = tm_ * ti_ * (3 * 4 + in_elt)      # gate/up/h f32 + h cast
        return dbl_in + dbl_out + acc + temps

    budget = max(vmem_cap - (16 << 20), 24 << 20)
    while est(tm, ti, th) > budget and ti > 128:
        ti = max(128, ti // 2)
        while I % ti != 0:
            ti -= 128
    nk = I // ti

    vmem_limit = int(max(min(vmem_cap - (8 << 20), est(tm, ti, th) + (8 << 20)),
                         16 << 20))

    # --- flatten + pad rows (padded rows are zeros: silu(0)*0 = 0, sliced off)
    x2d = x.reshape(M, H)
    if M_pad != M:
        x2d = jnp.pad(x2d, ((0, M_pad - M), (0, 0)))

    cost = pl.CostEstimate(
        flops=int(6 * M_pad * H * I + 4 * M_pad * I),
        transcendentals=int(M_pad * I),
        bytes_accessed=int(M_pad * H * (in_elt + out_elt)
                           + n_m * (2 * H * I * n_h + I * H) * in_elt),
    )

    out2d = pl.pallas_call(
        qwen3_mlp_kernel,
        out_shape=jax.ShapeDtypeStruct((M_pad, H), x.dtype),
        grid_spec=pltpu.PrefetchScalarGridSpec(
            num_scalar_prefetch=0,
            grid=(n_m, n_h, nk),
            in_specs=[
                pl.BlockSpec((tm, H), lambda i, j, k: (i, 0)),   # x row tile
                pl.BlockSpec((H, ti), lambda i, j, k: (0, k)),   # gate_proj
                pl.BlockSpec((H, ti), lambda i, j, k: (0, k)),   # up_proj
                pl.BlockSpec((ti, th), lambda i, j, k: (k, j)),  # down_proj
            ],
            out_specs=pl.BlockSpec((tm, th), lambda i, j, k: (i, j)),
            scratch_shapes=[pltpu.VMEM((tm, th), jnp.float32)],
        ),
        compiler_params=pltpu.CompilerParams(
            dimension_semantics=("parallel", "parallel", "arbitrary"),
            vmem_limit_bytes=vmem_limit,
        ),
        cost_estimate=cost,
    )(x2d, wg, wu, wd)

    return out2d[:M].reshape(B, S, H)


def _reference(x, wg, wu, wd):
    gate = jnp.einsum("bsh,hi->bsi", x.astype(jnp.float32), wg.astype(jnp.float32))
    up = jnp.einsum("bsh,hi->bsi", x.astype(jnp.float32), wu.astype(jnp.float32))
    h = jax.nn.silu(gate) * up
    return jnp.einsum("bsi,ih->bsh", h, wd.astype(jnp.float32))


def _rel_err(a, b):
    a = a.astype(jnp.float32)
    b = b.astype(jnp.float32)
    return float(jnp.linalg.norm(a - b) / (jnp.linalg.norm(b) + 1e-12))


if __name__ == "__main__":
    # Small shapes consistent with the module's forward (lane-aligned).
    batch, seq = 2, 8
    hidden_size = 256
    intermediate_size = 512

    key = jax.random.PRNGKey(0)
    kx, kg, ku, kd = jax.random.split(key, 4)

    x = jax.random.normal(kx, (batch, seq, hidden_size), dtype=jnp.float32)
    # "Linear" weights stored as [in, out] (transpose of torch's [out, in]).
    wg = (jax.random.normal(kg, (hidden_size, intermediate_size), dtype=jnp.float32)
          * (hidden_size ** -0.5))
    wu = (jax.random.normal(ku, (hidden_size, intermediate_size), dtype=jnp.float32)
          * (hidden_size ** -0.5))
    wd = (jax.random.normal(kd, (intermediate_size, hidden_size), dtype=jnp.float32)
          * (intermediate_size ** -0.5))

    ref = _reference(x, wg, wu, wd)

    # --- f32, default (generation-aware) tiles.
    out = jax.block_until_ready(qwen3_mlp(x, wg, wu, wd))
    assert out.shape == (batch, seq, hidden_size)
    assert _rel_err(out, ref) < 1e-3, "f32 mismatch vs reference"

    # --- exercise the reduction grid (nk > 1) and M-padding (M not % tm).
    x_odd = x[:1, :5]                                   # M = 5 -> padded rows
    out_odd = jax.block_until_ready(qwen3_mlp(x_odd, wg, wu, wd, tm=8, ti=128))
    ref_odd = _reference(x_odd, wg, wu, wd)
    assert _rel_err(out_odd, ref_odd) < 1e-3, "tiled-I / padded-M mismatch"

    # --- exercise the H-split (third parallel grid axis, th < H).
    out_th = jax.block_until_ready(qwen3_mlp(x, wg, wu, wd, ti=128, th=128))
    assert _rel_err(out_th, ref) < 1e-3, "H-split mismatch vs reference"

    # --- bf16 weights/activations with f32 accumulation (production dtype).
    xb, wgb, wub, wdb = (a.astype(jnp.bfloat16) for a in (x, wg, wu, wd))
    out_bf16 = jax.block_until_ready(qwen3_mlp(xb, wgb, wub, wdb))
    ref_bf16 = _reference(xb, wgb, wub, wdb)
    assert _rel_err(out_bf16, ref_bf16) < 2e-2, "bf16 mismatch vs reference"

    print("KERNEL_OK")
</pallas_src>

<mosaic_0001>
module attributes {stable_mosaic.version = 11 : i64} {
  func.func @qwen3_mlp_kernel(%arg0: i32, %arg1: i32, %arg2: i32, %arg3: memref<16x256xf32, #tpu.memory_space<vmem>>, %arg4: memref<256x512xf32, #tpu.memory_space<vmem>>, %arg5: memref<256x512xf32, #tpu.memory_space<vmem>>, %arg6: memref<512x256xf32, #tpu.memory_space<vmem>>, %arg7: memref<16x256xf32, #tpu.memory_space<vmem>>, %arg8: memref<16x256xf32, #tpu.memory_space<vmem>>) attributes {dimension_semantics = [#tpu.dimension_semantics<parallel>, #tpu.dimension_semantics<parallel>, #tpu.dimension_semantics<arbitrary>], iteration_bounds = array<i64: 1, 1, 1>, scalar_prefetch = 0 : i64, scratch_operands = 1 : i64, tpu.core_type = #tpu.core_type<tc>, window_params = [{transform_indices = @transform_0, window_bounds = array<i64: 16, 256>}, {transform_indices = @transform_1, window_bounds = array<i64: 256, 512>}, {transform_indices = @transform_2, window_bounds = array<i64: 256, 512>}, {transform_indices = @transform_3, window_bounds = array<i64: 512, 256>}, {transform_indices = @transform_4, window_bounds = array<i64: 16, 256>}]} {
    %c0_i32 = arith.constant 0 : i32
    %0 = arith.cmpi eq, %arg2, %c0_i32 : i32
    %1 = arith.extui %0 : i1 to i32
    %c0_i32_0 = arith.constant 0 : i32
    %2 = arith.cmpi ne, %1, %c0_i32_0 : i32
    scf.if %2 {
      %cst_17 = arith.constant 0.000000e+00 : f32
      %23 = vector.broadcast %cst_17 : f32 to vector<16x256xf32>
      %c0_18 = arith.constant 0 : index
      %c0_19 = arith.constant 0 : index
      %24 = vector.load %arg8[%c0_18, %c0_19] : memref<16x256xf32, #tpu.memory_space<vmem>>, vector<16x256xf32>
      tpu.vector_store %arg8[%c0_18, %c0_19], %23 {strides = array<i32>} : memref<16x256xf32, #tpu.memory_space<vmem>>, vector<16x256xf32>,
    } else {
    }
    %c0 = arith.constant 0 : index
    %c0_1 = arith.constant 0 : index
    %3 = vector.load %arg3[%c0, %c0_1] : memref<16x256xf32, #tpu.memory_space<vmem>>, vector<16x256xf32>
    %c0_2 = arith.constant 0 : index
    %c0_3 = arith.constant 0 : index
    %4 = vector.load %arg4[%c0_2, %c0_3] : memref<256x512xf32, #tpu.memory_space<vmem>>, vector<256x512xf32>
    %cst = arith.constant dense<0.000000e+00> : vector<16x512xf32>
    %5 = tpu.matmul %3, %4, %cst {dimension_numbers = #tpu.dot_dimension_numbers<[1], [0], [0], [1], [0, 0, 1, 1], [], []>} : vector<16x256xf32>, vector<256x512xf32>, vector<16x512xf32> -> vector<16x512xf32>
    %c0_4 = arith.constant 0 : index
    %c0_5 = arith.constant 0 : index
    %6 = vector.load %arg5[%c0_4, %c0_5] : memref<256x512xf32, #tpu.memory_space<vmem>>, vector<256x512xf32>
    %cst_6 = arith.constant dense<0.000000e+00> : vector<16x512xf32>
    %7 = tpu.matmul %3, %6, %cst_6 {dimension_numbers = #tpu.dot_dimension_numbers<[1], [0], [0], [1], [0, 0, 1, 1], [], []>} : vector<16x256xf32>, vector<256x512xf32>, vector<16x512xf32> -> vector<16x512xf32>
    %8 = arith.negf %5 : vector<16x512xf32>
    %9 = math.exp %8 : vector<16x512xf32>
    %cst_7 = arith.constant 1.000000e+00 : f32
    %10 = vector.broadcast %cst_7 : f32 to vector<16x512xf32>
    %11 = arith.addf %10, %9 : vector<16x512xf32>
    %12 = arith.divf %10, %11 : vector<16x512xf32>
    %13 = arith.mulf %5, %12 : vector<16x512xf32>
    %14 = arith.mulf %13, %7 : vector<16x512xf32>
    %c0_8 = arith.constant 0 : index
    %c0_9 = arith.constant 0 : index
    %15 = vector.load %arg8[%c0_8, %c0_9] : memref<16x256xf32, #tpu.memory_space<vmem>>, vector<16x256xf32>
    %c0_10 = arith.constant 0 : index
    %c0_11 = arith.constant 0 : index
    %16 = vector.load %arg6[%c0_10, %c0_11] : memref<512x256xf32, #tpu.memory_space<vmem>>, vector<512x256xf32>
    %cst_12 = arith.constant dense<0.000000e+00> : vector<16x256xf32>
    %17 = tpu.matmul %14, %16, %cst_12 {dimension_numbers = #tpu.dot_dimension_numbers<[1], [0], [0], [1], [0, 0, 1, 1], [], []>} : vector<16x512xf32>, vector<512x256xf32>, vector<16x256xf32> -> vector<16x256xf32>
    %18 = arith.addf %15, %17 : vector<16x256xf32>
    %c0_13 = arith.constant 0 : index
    %c0_14 = arith.constant 0 : index
    %19 = vector.load %arg8[%c0_13, %c0_14] : memref<16x256xf32, #tpu.memory_space<vmem>>, vector<16x256xf32>
    tpu.vector_store %arg8[%c0_13, %c0_14], %18 {strides = array<i32>} : memref<16x256xf32, #tpu.memory_space<vmem>>, vector<16x256xf32>,
    %c0_i32_15 = arith.constant 0 : i32
    %20 = arith.cmpi eq, %arg2, %c0_i32_15 : i32
    %21 = arith.extui %20 : i1 to i32
    %c0_i32_16 = arith.constant 0 : i32
    %22 = arith.cmpi ne, %21, %c0_i32_16 : i32
    scf.if %22 {
      %c0_17 = arith.constant 0 : index
      %c0_18 = arith.constant 0 : index
      %23 = vector.load %arg8[%c0_17, %c0_18] : memref<16x256xf32, #tpu.memory_space<vmem>>, vector<16x256xf32>
      %c0_19 = arith.constant 0 : index
      %c0_20 = arith.constant 0 : index
      %24 = vector.load %arg7[%c0_19, %c0_20] : memref<16x256xf32, #tpu.memory_space<vmem>>, vector<16x256xf32>
      tpu.vector_store %arg7[%c0_19, %c0_20], %23 {strides = array<i32>} : memref<16x256xf32, #tpu.memory_space<vmem>>, vector<16x256xf32>,
    } else {
    }
    return
  }
  func.func @transform_0(%arg0: i32, %arg1: i32, %arg2: i32) -> (i32, i32) {
    %c0_i32 = arith.constant 0 : i32
    %c0_i32_0 = arith.constant 0 : i32
    return %arg0, %c0_i32 : i32, i32
  }
  func.func @transform_1(%arg0: i32, %arg1: i32, %arg2: i32) -> (i32, i32) {
    %c0_i32 = arith.constant 0 : i32
    %c0_i32_0 = arith.constant 0 : i32
    return %c0_i32, %arg2 : i32, i32
  }
  func.func @transform_2(%arg0: i32, %arg1: i32, %arg2: i32) -> (i32, i32) {
    %c0_i32 = arith.constant 0 : i32
    %c0_i32_0 = arith.constant 0 : i32
    return %c0_i32, %arg2 : i32, i32
  }
  func.func @transform_3(%arg0: i32, %arg1: i32, %arg2: i32) -> (i32, i32) {
    %c0_i32 = arith.constant 0 : i32
    return %arg2, %arg1 : i32, i32
  }
  func.func @transform_4(%arg0: i32, %arg1: i32, %arg2: i32) -> (i32, i32) {
    %c0_i32 = arith.constant 0 : i32
    return %arg0, %arg1 : i32, i32
  }
}

</mosaic_0001>

<llo_original>
// kernel: tpu_custom_call.1
$region0: #{tpu_custom_call.1}
  #allocation0 [shape = 'u32[]', space=smem, size = 0x4, offset = 0x4, fixed_abs, tag = 'smem constant byte address 0x4 - core index']
  #allocation1 [shape = 'u32[144,128]{1,0:T(1,128)}', space=vmem, size = 0x12000, scoped, tag = 'internal scratch']
  #allocation2 [shape = 'f32[16,256]{1,0:T(8,128)}', space=vmem, size = 0x4000, scoped, tag = 'scratch operand']
  %s0 = inlined_call_operand.hbm [shape: f32[16,256], index: 0, kind: input, shape index: {}]
  %s1 = inlined_call_operand.hbm [shape: f32[256,512], index: 1, kind: input, shape index: {}]
  %s2 = inlined_call_operand.hbm [shape: f32[256,512], index: 2, kind: input, shape index: {}]
  %s3 = inlined_call_operand.hbm [shape: f32[512,256], index: 3, kind: input, shape index: {}]
  %s4 = inlined_call_operand.hbm [shape: f32[16,256], index: 4, kind: output, shape index: {}]
  %s5 = sld [smem:[#allocation0]]
  $region50: #{tpu_custom_call.1} parent=0
    _
  %s7 = ssub.s32 1, %s5
  %s8 = scalar_select 0, %s7, %s5
  $region1: #{tpu_custom_call.1} parent=0
    #allocation3 [shape = 'u8[16384]{0}', space=vmem, size = 0x4000, scoped, tag = 'input window, operand 0, single buffered']
    #allocation4 [shape = 's32[1]{0}', space=sflag, size = 0x4, scoped, tag = 'scoped memory for tpu_custom_call.1']
    #allocation5 [shape = 's32[1]{0}', space=sflag, size = 0x4, scoped, tag = 'scoped memory for tpu_custom_call.1']
    #allocation6 [shape = 'u8[524288]{0}', space=vmem, size = 0x80000, scoped, tag = 'input window, operand 1, single buffered']
    #allocation7 [shape = 's32[1]{0}', space=sflag, size = 0x4, scoped, tag = 'scoped memory for tpu_custom_call.1']
    #allocation8 [shape = 'u8[524288]{0}', space=vmem, size = 0x80000, scoped, tag = 'input window, operand 2, single buffered']
    #allocation9 [shape = 'u8[524288]{0}', space=vmem, size = 0x80000, scoped, tag = 'input window, operand 3, single buffered']
    #allocation10 [shape = 's32[1]{0}', space=sflag, size = 0x4, scoped, tag = 'scoped memory for tpu_custom_call.1']
    #allocation11 [shape = 'u8[16384]{0}', space=vmem, size = 0x4000, scoped, tag = 'output window, operand 0, single buffered']
    %9 = vsyncpa [#allocation4], 0
    %10 = vsyncpa [#allocation7], 0
    %11 = vsyncpa [#allocation10], 0
    %12 = vsyncpa [#allocation5], 0
    // Predicated region
    $region2: #{tpu_custom_call.1} parent=1 // pred_check
      _
    $region3: #{tpu_custom_call.1} parent=1 // pred_check_branch
      %14 = sbr.rel (0) target = $region5
    $region4: #{tpu_custom_call.1} parent=1 // pred_region
      %s16 = ssub.s32 512, 512
      %17 = vsyncadd [#allocation4], %s16
      %s18 = sshll.u32 [#allocation3], 4
      %s19 = int_to_ptr.vmem [resolvable:$true] %s18
      %24 = dma.hbm_to_vmem [thread:$0]  %s0, 512, %s19, [#allocation4], 256, 256, 16
    $region5: #{tpu_custom_call.1} parent=1 // pred_fallthru
      _
    // Predicated region
    $region6: #{tpu_custom_call.1} parent=1 // pred_check
      _
    $region7: #{tpu_custom_call.1} parent=1 // pred_check_branch
      %26 = sbr.rel (0) target = $region9
    $region8: #{tpu_custom_call.1} parent=1 // pred_region
      %s28 = ssub.s32 16384, 16384
      %29 = vsyncadd [#allocation7], %s28
      %s30 = sshll.u32 [#allocation6], 4
      %s31 = int_to_ptr.vmem [resolvable:$true] %s30
      %36 = dma.hbm_to_vmem [thread:$0]  %s1, 16384, %s31, [#allocation7], 512, 512, 32
    $region9: #{tpu_custom_call.1} parent=1 // pred_fallthru
      _
    // Predicated region
    $region10: #{tpu_custom_call.1} parent=1 // pred_check
      _
    $region11: #{tpu_custom_call.1} parent=1 // pred_check_branch
      %38 = sbr.rel (0) target = $region13
    $region12: #{tpu_custom_call.1} parent=1 // pred_region
      %s40 = ssub.s32 16384, 16384
      %41 = vsyncadd [#allocation7], %s40
      %s42 = sshll.u32 [#allocation8], 4
      %s43 = int_to_ptr.vmem [resolvable:$true] %s42
      %48 = dma.hbm_to_vmem [thread:$0]  %s2, 16384, %s43, [#allocation7], 512, 512, 32
    $region13: #{tpu_custom_call.1} parent=1 // pred_fallthru
      _
    // Predicated region
    $region14: #{tpu_custom_call.1} parent=1 // pred_check
      _
    $region15: #{tpu_custom_call.1} parent=1 // pred_check_branch
      %50 = sbr.rel (0) target = $region17
    $region16: #{tpu_custom_call.1} parent=1 // pred_region
      %s52 = ssub.s32 16384, 16384
      %53 = vsyncadd [#allocation10], %s52
      %s54 = sshll.u32 [#allocation9], 4
      %s55 = int_to_ptr.vmem [resolvable:$true] %s54
      %60 = dma.hbm_to_vmem [thread:$0]  %s3, 16384, %s55, [#allocation10], 256, 256, 16
    $region17: #{tpu_custom_call.1} parent=1 // pred_fallthru
      _
    // Predicated region
    $region18: #{tpu_custom_call.1} parent=1 // pred_check
      _
    $region19: #{tpu_custom_call.1} parent=1 // pred_check_branch
      %62 = sbr.rel (0) target = $region21
    $region20: #{tpu_custom_call.1} parent=1 // pred_region
      %63 = dma.done [#allocation4], 512
    $region21: #{tpu_custom_call.1} parent=1 // pred_fallthru
      _
    // Predicated region
    $region22: #{tpu_custom_call.1} parent=1 // pred_check
      _
    $region23: #{tpu_custom_call.1} parent=1 // pred_check_branch
      %65 = sbr.rel (0) target = $region25
    $region24: #{tpu_custom_call.1} parent=1 // pred_region
      %66 = dma.done [#allocation7], 16384
    $region25: #{tpu_custom_call.1} parent=1 // pred_fallthru
      _
    // Predicated region
    $region26: #{tpu_custom_call.1} parent=1 // pred_check
      _
    $region27: #{tpu_custom_call.1} parent=1 // pred_check_branch
      %68 = sbr.rel (0) target = $region29
    $region28: #{tpu_custom_call.1} parent=1 // pred_region
      %69 = dma.done [#allocation7], 16384
    $region29: #{tpu_custom_call.1} parent=1 // pred_fallthru
      _
    // Predicated region
    $region30: #{tpu_custom_call.1} parent=1 // pred_check
      _
    $region31: #{tpu_custom_call.1} parent=1 // pred_check_branch
      %71 = sbr.rel (0) target = $region33
    $region32: #{tpu_custom_call.1} parent=1 // pred_region
      %72 = dma.done [#allocation10], 16384
    $region33: #{tpu_custom_call.1} parent=1 // pred_fallthru
      _
    %p73 = scmp.eq.s32.totalorder 0, 0
    // Predicated region
    $region34: #{tpu_custom_call.1} parent=1 // pred_check
      %p74 = pneg %p73
    $region35: #{tpu_custom_call.1} parent=1 // pred_check_branch
      %76 = sbr.rel (%p74) target = $region37
    $region36: #{tpu_custom_call.1} parent=1 // pred_region
      %77 = vst [vmem:[#allocation2] sm:$0xff] 0.0
      %78 = vst [vmem:[#allocation2 + $0x8] sm:$0xff] 0.0
      %79 = vst [vmem:[#allocation2 + $0x10] sm:$0xff] 0.0
      %80 = vst [vmem:[#allocation2 + $0x18] sm:$0xff] 0.0
    $region37: #{tpu_custom_call.1} parent=1 // pred_fallthru
      _
    %v81 = vld [vmem:[#allocation3] sm:$0xff]
    %v82 = vld [vmem:[#allocation3 + $0x8] sm:$0xff]
    %v83 = vld [vmem:[#allocation3 + $0x10] sm:$0xff]
    %v84 = vld [vmem:[#allocation3 + $0x18] sm:$0xff]
    %v85 = vld [vmem:[#allocation6] sm:$0xff]
    %v86 = vld [vmem:[#allocation6 + $0x8] sm:$0xff]
    %v87 = vld [vmem:[#allocation6 + $0x10] sm:$0xff]
    %v88 = vld [vmem:[#allocation6 + $0x18] sm:$0xff]
    %v89 = vld [vmem:[#allocation6 + $0x20] sm:$0xff]
    %v90 = vld [vmem:[#allocation6 + $0x28] sm:$0xff]
    %v91 = vld [vmem:[#allocation6 + $0x30] sm:$0xff]
    %v92 = vld [vmem:[#allocation6 + $0x38] sm:$0xff]
    %v93 = vld [vmem:[#allocation6 + $0x40] sm:$0xff]
    %v94 = vld [vmem:[#allocation6 + $0x48] sm:$0xff]
    %v95 = vld [vmem:[#allocation6 + $0x50] sm:$0xff]
    %v96 = vld [vmem:[#allocation6 + $0x58] sm:$0xff]
    %v97 = vld [vmem:[#allocation6 + $0x60] sm:$0xff]
    %v98 = vld [vmem:[#allocation6 + $0x68] sm:$0xff]
    %v99 = vld [vmem:[#allocation6 + $0x70] sm:$0xff]
    %v100 = vld [vmem:[#allocation6 + $0x78] sm:$0xff]
    %v101 = vld [vmem:[#allocation6 + $0x80] sm:$0xff]
    %v102 = vld [vmem:[#allocation6 + $0x88] sm:$0xff]
    %v103 = vld [vmem:[#allocation6 + $0x90] sm:$0xff]
    %v104 = vld [vmem:[#allocation6 + $0x98] sm:$0xff]
    %v105 = vld [vmem:[#allocation6 + $0xa0] sm:$0xff]
    %v106 = vld [vmem:[#allocation6 + $0xa8] sm:$0xff]
    %v107 = vld [vmem:[#allocation6 + $0xb0] sm:$0xff]
    %v108 = vld [vmem:[#allocation6 + $0xb8] sm:$0xff]
    %v109 = vld [vmem:[#allocation6 + $0xc0] sm:$0xff]
    %v110 = vld [vmem:[#allocation6 + $0xc8] sm:$0xff]
    %v111 = vld [vmem:[#allocation6 + $0xd0] sm:$0xff]
    %v112 = vld [vmem:[#allocation6 + $0xd8] sm:$0xff]
    %v113 = vld [vmem:[#allocation6 + $0xe0] sm:$0xff]
    %v114 = vld [vmem:[#allocation6 + $0xe8] sm:$0xff]
    %v115 = vld [vmem:[#allocation6 + $0xf0] sm:$0xff]
    %v116 = vld [vmem:[#allocation6 + $0xf8] sm:$0xff]
    %v117 = vld [vmem:[#allocation6 + $0x100] sm:$0xff]
    %v118 = vld [vmem:[#allocation6 + $0x108] sm:$0xff]
    %v119 = vld [vmem:[#allocation6 + $0x110] sm:$0xff]
    %v120 = vld [vmem:[#allocation6 + $0x118] sm:$0xff]
    %v121 = vld [vmem:[#allocation6 + $0x120] sm:$0xff]
    %v122 = vld [vmem:[#allocation6 + $0x128] sm:$0xff]
    %v123 = vld [vmem:[#allocation6 + $0x130] sm:$0xff]
    %v124 = vld [vmem:[#allocation6 + $0x138] sm:$0xff]
    %v125 = vld [vmem:[#allocation6 + $0x140] sm:$0xff]
    %v126 = vld [vmem:[#allocation6 + $0x148] sm:$0xff]
    %v127 = vld [vmem:[#allocation6 + $0x150] sm:$0xff]
    %v128 = vld [vmem:[#allocation6 + $0x158] sm:$0xff]
    %v129 = vld [vmem:[#allocation6 + $0x160] sm:$0xff]
    %v130 = vld [vmem:[#allocation6 + $0x168] sm:$0xff]
    %v131 = vld [vmem:[#allocation6 + $0x170] sm:$0xff]
    %v132 = vld [vmem:[#allocation6 + $0x178] sm:$0xff]
    %v133 = vld [vmem:[#allocation6 + $0x180] sm:$0xff]
    %v134 = vld [vmem:[#allocation6 + $0x188] sm:$0xff]
    %v135 = vld [vmem:[#allocation6 + $0x190] sm:$0xff]
    %v136 = vld [vmem:[#allocation6 + $0x198] sm:$0xff]
    %v137 = vld [vmem:[#allocation6 + $0x1a0] sm:$0xff]
    %v138 = vld [vmem:[#allocation6 + $0x1a8] sm:$0xff]
    %v139 = vld [vmem:[#allocation6 + $0x1b0] sm:$0xff]
    %v140 = vld [vmem:[#allocation6 + $0x1b8] sm:$0xff]
    %v141 = vld [vmem:[#allocation6 + $0x1c0] sm:$0xff]
    %v142 = vld [vmem:[#allocation6 + $0x1c8] sm:$0xff]
    %v143 = vld [vmem:[#allocation6 + $0x1d0] sm:$0xff]
    %v144 = vld [vmem:[#allocation6 + $0x1d8] sm:$0xff]
    %v145 = vld [vmem:[#allocation6 + $0x1e0] sm:$0xff]
    %v146 = vld [vmem:[#allocation6 + $0x1e8] sm:$0xff]
    %v147 = vld [vmem:[#allocation6 + $0x1f0] sm:$0xff]
    %v148 = vld [vmem:[#allocation6 + $0x1f8] sm:$0xff]
    %v149 = vld [vmem:[#allocation6 + $0x200] sm:$0xff]
    %v150 = vld [vmem:[#allocation6 + $0x208] sm:$0xff]
    %v151 = vld [vmem:[#allocation6 + $0x210] sm:$0xff]
    %v152 = vld [vmem:[#allocation6 + $0x218] sm:$0xff]
    %v153 = vld [vmem:[#allocation6 + $0x220] sm:$0xff]
    %v154 = vld [vmem:[#allocation6 + $0x228] sm:$0xff]
    %v155 = vld [vmem:[#allocation6 + $0x230] sm:$0xff]
    %v156 = vld [vmem:[#allocation6 + $0x238] sm:$0xff]
    %v157 = vld [vmem:[#allocation6 + $0x240] sm:$0xff]
    %v158 = vld [vmem:[#allocation6 + $0x248] sm:$0xff]
    %v159 = vld [vmem:[#allocation6 + $0x250] sm:$0xff]
    %v160 = vld [vmem:[#allocation6 + $0x258] sm:$0xff]
    %v161 = vld [vmem:[#allocation6 + $0x260] sm:$0xff]
    %v162 = vld [vmem:[#allocation6 + $0x268] sm:$0xff]
    %v163 = vld [vmem:[#allocation6 + $0x270] sm:$0xff]
    %v164 = vld [vmem:[#allocation6 + $0x278] sm:$0xff]
    %v165 = vld [vmem:[#allocation6 + $0x280] sm:$0xff]
    %v166 = vld [vmem:[#allocation6 + $0x288] sm:$0xff]
    %v167 = vld [vmem:[#allocation6 + $0x290] sm:$0xff]
    %v168 = vld [vmem:[#allocation6 + $0x298] sm:$0xff]
    %v169 = vld [vmem:[#allocation6 + $0x2a0] sm:$0xff]
    %v170 = vld [vmem:[#allocation6 + $0x2a8] sm:$0xff]
    %v171 = vld [vmem:[#allocation6 + $0x2b0] sm:$0xff]
    %v172 = vld [vmem:[#allocation6 + $0x2b8] sm:$0xff]
    %v173 = vld [vmem:[#allocation6 + $0x2c0] sm:$0xff]
    %v174 = vld [vmem:[#allocation6 + $0x2c8] sm:$0xff]
    %v175 = vld [vmem:[#allocation6 + $0x2d0] sm:$0xff]
    %v176 = vld [vmem:[#allocation6 + $0x2d8] sm:$0xff]
    %v177 = vld [vmem:[#allocation6 + $0x2e0] sm:$0xff]
    %v178 = vld [vmem:[#allocation6 + $0x2e8] sm:$0xff]
    %v179 = vld [vmem:[#allocation6 + $0x2f0] sm:$0xff]
    %v180 = vld [vmem:[#allocation6 + $0x2f8] sm:$0xff]
    %v181 = vld [vmem:[#allocation6 + $0x300] sm:$0xff]
    %v182 = vld [vmem:[#allocation6 + $0x308] sm:$0xff]
    %v183 = vld [vmem:[#allocation6 + $0x310] sm:$0xff]
    %v184 = vld [vmem:[#allocation6 + $0x318] sm:$0xff]
    %v185 = vld [vmem:[#allocation6 + $0x320] sm:$0xff]
    %v186 = vld [vmem:[#allocation6 + $0x328] sm:$0xff]
    %v187 = vld [vmem:[#allocation6 + $0x330] sm:$0xff]
    %v188 = vld [vmem:[#allocation6 + $0x338] sm:$0xff]
    %v189 = vld [vmem:[#allocation6 + $0x340] sm:$0xff]
    %v190 = vld [vmem:[#allocation6 + $0x348] sm:$0xff]
    %v191 = vld [vmem:[#allocation6 + $0x350] sm:$0xff]
    %v192 = vld [vmem:[#allocation6 + $0x358] sm:$0xff]
    %v193 = vld [vmem:[#allocation6 + $0x360] sm:$0xff]
    %v194 = vld [vmem:[#allocation6 + $0x368] sm:$0xff]
    %v195 = vld [vmem:[#allocation6 + $0x370] sm:$0xff]
    %v196 = vld [vmem:[#allocation6 + $0x378] sm:$0xff]
    %v197 = vld [vmem:[#allocation6 + $0x380] sm:$0xff]
    %v198 = vld [vmem:[#allocation6 + $0x388] sm:$0xff]
    %v199 = vld [vmem:[#allocation6 + $0x390] sm:$0xff]
    %v200 = vld [vmem:[#allocation6 + $0x398] sm:$0xff]
    %v201 = vld [vmem:[#allocation6 + $0x3a0] sm:$0xff]
    %v202 = vld [vmem:[#allocation6 + $0x3a8] sm:$0xff]
    %v203 = vld [vmem:[#allocation6 + $0x3b0] sm:$0xff]
    %v204 = vld [vmem:[#allocation6 + $0x3b8] sm:$0xff]
    %v205 = vld [vmem:[#allocation6 + $0x3c0] sm:$0xff]
    %v206 = vld [vmem:[#allocation6 + $0x3c8] sm:$0xff]
    %v207 = vld [vmem:[#allocation6 + $0x3d0] sm:$0xff]
    %v208 = vld [vmem:[#allocation6 + $0x3d8] sm:$0xff]
    %v209 = vld [vmem:[#allocation6 + $0x3e0] sm:$0xff]
    %v210 = vld [vmem:[#allocation6 + $0x3e8] sm:$0xff]
    %v211 = vld [vmem:[#allocation6 + $0x3f0] sm:$0xff]
    %v212 = vld [vmem:[#allocation6 + $0x3f8] sm:$0xff]
    %213 = vmatprep.subr.mxu0 %v86
    %214 = vmatpush1.msra.mxu0 %v85
    %215 = vmatprep.subr.mxu0 %v90
    %216 = vmatpush1.msra.mxu0 %v89
    %217 = vmatprep.subr.mxu0 %v94
    %218 = vmatpush1.msra.mxu0 %v93
    %219 = vmatprep.subr.mxu0 %v98
    %220 = vmatpush1.msra.mxu0 %v97
    %221 = vmatprep.subr.mxu0 %v102
    %222 = vmatpush1.msra.mxu0 %v101
    %223 = vmatprep.subr.mxu0 %v106
    %224 = vmatpush1.msra.mxu0 %v105
    %225 = vmatprep.subr.mxu0 %v110
    %226 = vmatpush1.msra.mxu0 %v109
    %227 = vmatprep.subr.mxu0 %v114
    %228 = vmatpush1.msra.mxu0 %v113
    %229 = vmatprep.subr.mxu0 %v118
    %230 = vmatpush1.msra.mxu0 %v117
    %231 = vmatprep.subr.mxu0 %v122
    %232 = vmatpush1.msra.mxu0 %v121
    %233 = vmatprep.subr.mxu0 %v126
    %234 = vmatpush1.msra.mxu0 %v125
    %235 = vmatprep.subr.mxu0 %v130
    %236 = vmatpush1.msra.mxu0 %v129
    %237 = vmatprep.subr.mxu0 %v134
    %238 = vmatpush1.msra.mxu0 %v133
    %239 = vmatprep.subr.mxu0 %v138
    %240 = vmatpush1.msra.mxu0 %v137
    %241 = vmatprep.subr.mxu0 %v142
    %242 = vmatpush1.msra.mxu0 %v141
    %243 = vmatprep.subr.mxu0 %v146
    %244 = vmatpush1.msra.mxu0 %v145
    %245 = vmatprep.subr.mxu0 %v150
    %246 = vmatpush1.msra.mxu0 %v149
    %247 = vmatprep.subr.mxu0 %v154
    %248 = vmatpush1.msra.mxu0 %v153
    %249 = vmatprep.subr.mxu0 %v158
    %250 = vmatpush1.msra.mxu0 %v157
    %251 = vmatprep.subr.mxu0 %v162
    %252 = vmatpush1.msra.mxu0 %v161
    %253 = vmatprep.subr.mxu0 %v166
    %254 = vmatpush1.msra.mxu0 %v165
    %255 = vmatprep.subr.mxu0 %v170
    %256 = vmatpush1.msra.mxu0 %v169
    %257 = vmatprep.subr.mxu0 %v174
    %258 = vmatpush1.msra.mxu0 %v173
    %259 = vmatprep.subr.mxu0 %v178
    %260 = vmatpush1.msra.mxu0 %v177
    %261 = vmatprep.subr.mxu0 %v182
    %262 = vmatpush1.msra.mxu0 %v181
    %263 = vmatprep.subr.mxu0 %v186
    %264 = vmatpush1.msra.mxu0 %v185
    %265 = vmatprep.subr.mxu0 %v190
    %266 = vmatpush1.msra.mxu0 %v189
    %267 = vmatprep.subr.mxu0 %v194
    %268 = vmatpush1.msra.mxu0 %v193
    %269 = vmatprep.subr.mxu0 %v198
    %270 = vmatpush1.msra.mxu0 %v197
    %271 = vmatprep.subr.mxu0 %v202
    %272 = vmatpush1.msra.mxu0 %v201
    %273 = vmatprep.subr.mxu0 %v206
    %274 = vmatpush1.msra.mxu0 %v205
    %275 = vmatprep.subr.mxu0 %v210
    %276 = vmatpush1.msra.mxu0 %v209
    %277 = vmatprep.mubr.f32.mxu0 %v82
    %278 = vmatmul.mubr.f32.gmra.mrb[0].mxu0 %v81
    %v279 = vpop.f32.mrb[0].mxu0
    %v280 = vadd.f32 0.0, %v279
    %v281 = vpop.f32.mrb[0].mxu0
    %v282 = vadd.f32 0.0, %v281
    %283 = vmatprep.mubr.f32.mxu0 %v84
    %284 = vmatmul.mubr.f32.gmra.mrb[0].mxu0 %v83
    %v285 = vpop.f32.mrb[0].mxu0
    %v286 = vadd.f32 0.0, %v285
    %v287 = vpop.f32.mrb[0].mxu0
    %v288 = vadd.f32 0.0, %v287
    %289 = vdwg.mxu0
    %290 = vmatprep.subr.mxu0 %v88
    %291 = vmatpush1.msra.mxu0 %v87
    %292 = vmatprep.subr.mxu0 %v92
    %293 = vmatpush1.msra.mxu0 %v91
    %294 = vmatprep.subr.mxu0 %v96
    %295 = vmatpush1.msra.mxu0 %v95
    %296 = vmatprep.subr.mxu0 %v100
    %297 = vmatpush1.msra.mxu0 %v99
    %298 = vmatprep.subr.mxu0 %v104
    %299 = vmatpush1.msra.mxu0 %v103
    %300 = vmatprep.subr.mxu0 %v108
    %301 = vmatpush1.msra.mxu0 %v107
    %302 = vmatprep.subr.mxu0 %v112
    %303 = vmatpush1.msra.mxu0 %v111
    %304 = vmatprep.subr.mxu0 %v116
    %305 = vmatpush1.msra.mxu0 %v115
    %306 = vmatprep.subr.mxu0 %v120
    %307 = vmatpush1.msra.mxu0 %v119
    %308 = vmatprep.subr.mxu0 %v124
    %309 = vmatpush1.msra.mxu0 %v123
    %310 = vmatprep.subr.mxu0 %v128
    %311 = vmatpush1.msra.mxu0 %v127
    %312 = vmatprep.subr.mxu0 %v132
    %313 = vmatpush1.msra.mxu0 %v131
    %314 = vmatprep.subr.mxu0 %v136
    %315 = vmatpush1.msra.mxu0 %v135
    %316 = vmatprep.subr.mxu0 %v140
    %317 = vmatpush1.msra.mxu0 %v139
    %318 = vmatprep.subr.mxu0 %v144
    %319 = vmatpush1.msra.mxu0 %v143
    %320 = vmatprep.subr.mxu0 %v148
    %321 = vmatpush1.msra.mxu0 %v147
    %322 = vmatprep.subr.mxu0 %v152
    %323 = vmatpush1.msra.mxu0 %v151
    %324 = vmatprep.subr.mxu0 %v156
    %325 = vmatpush1.msra.mxu0 %v155
    %326 = vmatprep.subr.mxu0 %v160
    %327 = vmatpush1.msra.mxu0 %v159
    %328 = vmatprep.subr.mxu0 %v164
    %329 = vmatpush1.msra.mxu0 %v163
    %330 = vmatprep.subr.mxu0 %v168
    %331 = vmatpush1.msra.mxu0 %v167
    %332 = vmatprep.subr.mxu0 %v172
    %333 = vmatpush1.msra.mxu0 %v171
    %334 = vmatprep.subr.mxu0 %v176
    %335 = vmatpush1.msra.mxu0 %v175
    %336 = vmatprep.subr.mxu0 %v180
    %337 = vmatpush1.msra.mxu0 %v179
    %338 = vmatprep.subr.mxu0 %v184
    %339 = vmatpush1.msra.mxu0 %v183
    %340 = vmatprep.subr.mxu0 %v188
    %341 = vmatpush1.msra.mxu0 %v187
    %342 = vmatprep.subr.mxu0 %v192
    %343 = vmatpush1.msra.mxu0 %v191
    %344 = vmatprep.subr.mxu0 %v196
    %345 = vmatpush1.msra.mxu0 %v195
    %346 = vmatprep.subr.mxu0 %v200
    %347 = vmatpush1.msra.mxu0 %v199
    %348 = vmatprep.subr.mxu0 %v204
    %349 = vmatpush1.msra.mxu0 %v203
    %350 = vmatprep.subr.mxu0 %v208
    %351 = vmatpush1.msra.mxu0 %v207
    %352 = vmatprep.subr.mxu0 %v212
    %353 = vmatpush1.msra.mxu0 %v211
    %354 = vmatprep.mubr.f32.mxu0 %v82
    %355 = vmatmul.mubr.f32.gmra.mrb[0].mxu0 %v81
    %v356 = vpop.f32.mrb[0].mxu0
    %v357 = vadd.f32 0.0, %v356
    %v358 = vpop.f32.mrb[0].mxu0
    %v359 = vadd.f32 0.0, %v358
    %360 = vmatprep.mubr.f32.mxu0 %v84
    %361 = vmatmul.mubr.f32.gmra.mrb[0].mxu0 %v83
    %v362 = vpop.f32.mrb[0].mxu0
    %v363 = vadd.f32 0.0, %v362
    %v364 = vpop.f32.mrb[0].mxu0
    %v365 = vadd.f32 0.0, %v364
    %366 = vdwg.mxu0
    %v367 = vld [vmem:[#allocation8] sm:$0xff]
    %v368 = vld [vmem:[#allocation8 + $0x8] sm:$0xff]
    %v369 = vld [vmem:[#allocation8 + $0x10] sm:$0xff]
    %v370 = vld [vmem:[#allocation8 + $0x18] sm:$0xff]
    %v371 = vld [vmem:[#allocation8 + $0x20] sm:$0xff]
    %v372 = vld [vmem:[#allocation8 + $0x28] sm:$0xff]
    %v373 = vld [vmem:[#allocation8 + $0x30] sm:$0xff]
    %v374 = vld [vmem:[#allocation8 + $0x38] sm:$0xff]
    %v375 = vld [vmem:[#allocation8 + $0x40] sm:$0xff]
    %v376 = vld [vmem:[#allocation8 + $0x48] sm:$0xff]
    %v377 = vld [vmem:[#allocation8 + $0x50] sm:$0xff]
    %v378 = vld [vmem:[#allocation8 + $0x58] sm:$0xff]
    %v379 = vld [vmem:[#allocation8 + $0x60] sm:$0xff]
    %v380 = vld [vmem:[#allocation8 + $0x68] sm:$0xff]
    %v381 = vld [vmem:[#allocation8 + $0x70] sm:$0xff]
    %v382 = vld [vmem:[#allocation8 + $0x78] sm:$0xff]
    %v383 = vld [vmem:[#allocation8 + $0x80] sm:$0xff]
    %v384 = vld [vmem:[#allocation8 + $0x88] sm:$0xff]
    %v385 = vld [vmem:[#allocation8 + $0x90] sm:$0xff]
    %v386 = vld [vmem:[#allocation8 + $0x98] sm:$0xff]
    %v387 = vld [vmem:[#allocation8 + $0xa0] sm:$0xff]
    %v388 = vld [vmem:[#allocation8 + $0xa8] sm:$0xff]
    %v389 = vld [vmem:[#allocation8 + $0xb0] sm:$0xff]
    %v390 = vld [vmem:[#allocation8 + $0xb8] sm:$0xff]
    %v391 = vld [vmem:[#allocation8 + $0xc0] sm:$0xff]
    %v392 = vld [vmem:[#allocation8 + $0xc8] sm:$0xff]
    %v393 = vld [vmem:[#allocation8 + $0xd0] sm:$0xff]
    %v394 = vld [vmem:[#allocation8 + $0xd8] sm:$0xff]
    %v395 = vld [vmem:[#allocation8 + $0xe0] sm:$0xff]
    %v396 = vld [vmem:[#allocation8 + $0xe8] sm:$0xff]
    %v397 = vld [vmem:[#allocation8 + $0xf0] sm:$0xff]
    %v398 = vld [vmem:[#allocation8 + $0xf8] sm:$0xff]
    %v399 = vld [vmem:[#allocation8 + $0x100] sm:$0xff]
    %v400 = vld [vmem:[#allocation8 + $0x108] sm:$0xff]
    %v401 = vld [vmem:[#allocation8 + $0x110] sm:$0xff]
    %v402 = vld [vmem:[#allocation8 + $0x118] sm:$0xff]
    %v403 = vld [vmem:[#allocation8 + $0x120] sm:$0xff]
    %v404 = vld [vmem:[#allocation8 + $0x128] sm:$0xff]
    %v405 = vld [vmem:[#allocation8 + $0x130] sm:$0xff]
    %v406 = vld [vmem:[#allocation8 + $0x138] sm:$0xff]
    %v407 = vld [vmem:[#allocation8 + $0x140] sm:$0xff]
    %v408 = vld [vmem:[#allocation8 + $0x148] sm:$0xff]
    %v409 = vld [vmem:[#allocation8 + $0x150] sm:$0xff]
    %v410 = vld [vmem:[#allocation8 + $0x158] sm:$0xff]
    %v411 = vld [vmem:[#allocation8 + $0x160] sm:$0xff]
    %v412 = vld [vmem:[#allocation8 + $0x168] sm:$0xff]
    %v413 = vld [vmem:[#allocation8 + $0x170] sm:$0xff]
    %v414 = vld [vmem:[#allocation8 + $0x178] sm:$0xff]
    %v415 = vld [vmem:[#allocation8 + $0x180] sm:$0xff]
    %v416 = vld [vmem:[#allocation8 + $0x188] sm:$0xff]
    %v417 = vld [vmem:[#allocation8 + $0x190] sm:$0xff]
    %v418 = vld [vmem:[#allocation8 + $0x198] sm:$0xff]
    %v419 = vld [vmem:[#allocation8 + $0x1a0] sm:$0xff]
    %v420 = vld [vmem:[#allocation8 + $0x1a8] sm:$0xff]
    %v421 = vld [vmem:[#allocation8 + $0x1b0] sm:$0xff]
    %v422 = vld [vmem:[#allocation8 + $0x1b8] sm:$0xff]
    %v423 = vld [vmem:[#allocation8 + $0x1c0] sm:$0xff]
    %v424 = vld [vmem:[#allocation8 + $0x1c8] sm:$0xff]
    %v425 = vld [vmem:[#allocation8 + $0x1d0] sm:$0xff]
    %v426 = vld [vmem:[#allocation8 + $0x1d8] sm:$0xff]
    %v427 = vld [vmem:[#allocation8 + $0x1e0] sm:$0xff]
    %v428 = vld [vmem:[#allocation8 + $0x1e8] sm:$0xff]
    %v429 = vld [vmem:[#allocation8 + $0x1f0] sm:$0xff]
    %v430 = vld [vmem:[#allocation8 + $0x1f8] sm:$0xff]
    %v431 = vld [vmem:[#allocation8 + $0x200] sm:$0xff]
    %v432 = vld [vmem:[#allocation8 + $0x208] sm:$0xff]
    %v433 = vld [vmem:[#allocation8 + $0x210] sm:$0xff]
    %v434 = vld [vmem:[#allocation8 + $0x218] sm:$0xff]
    %v435 = vld [vmem:[#allocation8 + $0x220] sm:$0xff]
    %v436 = vld [vmem:[#allocation8 + $0x228] sm:$0xff]
    %v437 = vld [vmem:[#allocation8 + $0x230] sm:$0xff]
    %v438 = vld [vmem:[#allocation8 + $0x238] sm:$0xff]
    %v439 = vld [vmem:[#allocation8 + $0x240] sm:$0xff]
    %v440 = vld [vmem:[#allocation8 + $0x248] sm:$0xff]
    %v441 = vld [vmem:[#allocation8 + $0x250] sm:$0xff]
    %v442 = vld [vmem:[#allocation8 + $0x258] sm:$0xff]
    %v443 = vld [vmem:[#allocation8 + $0x260] sm:$0xff]
    %v444 = vld [vmem:[#allocation8 + $0x268] sm:$0xff]
    %v445 = vld [vmem:[#allocation8 + $0x270] sm:$0xff]
    %v446 = vld [vmem:[#allocation8 + $0x278] sm:$0xff]
    %v447 = vld [vmem:[#allocation8 + $0x280] sm:$0xff]
    %v448 = vld [vmem:[#allocation8 + $0x288] sm:$0xff]
    %v449 = vld [vmem:[#allocation8 + $0x290] sm:$0xff]
    %v450 = vld [vmem:[#allocation8 + $0x298] sm:$0xff]
    %v451 = vld [vmem:[#allocation8 + $0x2a0] sm:$0xff]
    %v452 = vld [vmem:[#allocation8 + $0x2a8] sm:$0xff]
    %v453 = vld [vmem:[#allocation8 + $0x2b0] sm:$0xff]
    %v454 = vld [vmem:[#allocation8 + $0x2b8] sm:$0xff]
    %v455 = vld [vmem:[#allocation8 + $0x2c0] sm:$0xff]
    %v456 = vld [vmem:[#allocation8 + $0x2c8] sm:$0xff]
    %v457 = vld [vmem:[#allocation8 + $0x2d0] sm:$0xff]
    %v458 = vld [vmem:[#allocation8 + $0x2d8] sm:$0xff]
    %v459 = vld [vmem:[#allocation8 + $0x2e0] sm:$0xff]
    %v460 = vld [vmem:[#allocation8 + $0x2e8] sm:$0xff]
    %v461 = vld [vmem:[#allocation8 + $0x2f0] sm:$0xff]
    %v462 = vld [vmem:[#allocation8 + $0x2f8] sm:$0xff]
    %v463 = vld [vmem:[#allocation8 + $0x300] sm:$0xff]
    %v464 = vld [vmem:[#allocation8 + $0x308] sm:$0xff]
    %v465 = vld [vmem:[#allocation8 + $0x310] sm:$0xff]
    %v466 = vld [vmem:[#allocation8 + $0x318] sm:$0xff]
    %v467 = vld [vmem:[#allocation8 + $0x320] sm:$0xff]
    %v468 = vld [vmem:[#allocation8 + $0x328] sm:$0xff]
    %v469 = vld [vmem:[#allocation8 + $0x330] sm:$0xff]
    %v470 = vld [vmem:[#allocation8 + $0x338] sm:$0xff]
    %v471 = vld [vmem:[#allocation8 + $0x340] sm:$0xff]
    %v472 = vld [vmem:[#allocation8 + $0x348] sm:$0xff]
    %v473 = vld [vmem:[#allocation8 + $0x350] sm:$0xff]
    %v474 = vld [vmem:[#allocation8 + $0x358] sm:$0xff]
    %v475 = vld [vmem:[#allocation8 + $0x360] sm:$0xff]
    %v476 = vld [vmem:[#allocation8 + $0x368] sm:$0xff]
    %v477 = vld [vmem:[#allocation8 + $0x370] sm:$0xff]
    %v478 = vld [vmem:[#allocation8 + $0x378] sm:$0xff]
    %v479 = vld [vmem:[#allocation8 + $0x380] sm:$0xff]
    %v480 = vld [vmem:[#allocation8 + $0x388] sm:$0xff]
    %v481 = vld [vmem:[#allocation8 + $0x390] sm:$0xff]
    %v482 = vld [vmem:[#allocation8 + $0x398] sm:$0xff]
    %v483 = vld [vmem:[#allocation8 + $0x3a0] sm:$0xff]
    %v484 = vld [vmem:[#allocation8 + $0x3a8] sm:$0xff]
    %v485 = vld [vmem:[#allocation8 + $0x3b0] sm:$0xff]
    %v486 = vld [vmem:[#allocation8 + $0x3b8] sm:$0xff]
    %v487 = vld [vmem:[#allocation8 + $0x3c0] sm:$0xff]
    %v488 = vld [vmem:[#allocation8 + $0x3c8] sm:$0xff]
    %v489 = vld [vmem:[#allocation8 + $0x3d0] sm:$0xff]
    %v490 = vld [vmem:[#allocation8 + $0x3d8] sm:$0xff]
    %v491 = vld [vmem:[#allocation8 + $0x3e0] sm:$0xff]
    %v492 = vld [vmem:[#allocation8 + $0x3e8] sm:$0xff]
    %v493 = vld [vmem:[#allocation8 + $0x3f0] sm:$0xff]
    %v494 = vld [vmem:[#allocation8 + $0x3f8] sm:$0xff]
    %495 = vmatprep.subr.mxu0 %v368
    %496 = vmatpush1.msra.mxu0 %v367
    %497 = vmatprep.subr.mxu0 %v372
    %498 = vmatpush1.msra.mxu0 %v371
    %499 = vmatprep.subr.mxu0 %v376
    %500 = vmatpush1.msra.mxu0 %v375
    %501 = vmatprep.subr.mxu0 %v380
    %502 = vmatpush1.msra.mxu0 %v379
    %503 = vmatprep.subr.mxu0 %v384
    %504 = vmatpush1.msra.mxu0 %v383
    %505 = vmatprep.subr.mxu0 %v388
    %506 = vmatpush1.msra.mxu0 %v387
    %507 = vmatprep.subr.mxu0 %v392
    %508 = vmatpush1.msra.mxu0 %v391
    %509 = vmatprep.subr.mxu0 %v396
    %510 = vmatpush1.msra.mxu0 %v395
    %511 = vmatprep.subr.mxu0 %v400
    %512 = vmatpush1.msra.mxu0 %v399
    %513 = vmatprep.subr.mxu0 %v404
    %514 = vmatpush1.msra.mxu0 %v403
    %515 = vmatprep.subr.mxu0 %v408
    %516 = vmatpush1.msra.mxu0 %v407
    %517 = vmatprep.subr.mxu0 %v412
    %518 = vmatpush1.msra.mxu0 %v411
    %519 = vmatprep.subr.mxu0 %v416
    %520 = vmatpush1.msra.mxu0 %v415
    %521 = vmatprep.subr.mxu0 %v420
    %522 = vmatpush1.msra.mxu0 %v419
    %523 = vmatprep.subr.mxu0 %v424
    %524 = vmatpush1.msra.mxu0 %v423
    %525 = vmatprep.subr.mxu0 %v428
    %526 = vmatpush1.msra.mxu0 %v427
    %527 = vmatprep.subr.mxu0 %v432
    %528 = vmatpush1.msra.mxu0 %v431
    %529 = vmatprep.subr.mxu0 %v436
    %530 = vmatpush1.msra.mxu0 %v435
    %531 = vmatprep.subr.mxu0 %v440
    %532 = vmatpush1.msra.mxu0 %v439
    %533 = vmatprep.subr.mxu0 %v444
    %534 = vmatpush1.msra.mxu0 %v443
    %535 = vmatprep.subr.mxu0 %v448
    %536 = vmatpush1.msra.mxu0 %v447
    %537 = vmatprep.subr.mxu0 %v452
    %538 = vmatpush1.msra.mxu0 %v451
    %539 = vmatprep.subr.mxu0 %v456
    %540 = vmatpush1.msra.mxu0 %v455
    %541 = vmatprep.subr.mxu0 %v460
    %542 = vmatpush1.msra.mxu0 %v459
    %543 = vmatprep.subr.mxu0 %v464
    %544 = vmatpush1.msra.mxu0 %v463
    %545 = vmatprep.subr.mxu0 %v468
    %546 = vmatpush1.msra.mxu0 %v467
    %547 = vmatprep.subr.mxu0 %v472
    %548 = vmatpush1.msra.mxu0 %v471
    %549 = vmatprep.subr.mxu0 %v476
    %550 = vmatpush1.msra.mxu0 %v475
    %551 = vmatprep.subr.mxu0 %v480
    %552 = vmatpush1.msra.mxu0 %v479
    %553 = vmatprep.subr.mxu0 %v484
    %554 = vmatpush1.msra.mxu0 %v483
    %555 = vmatprep.subr.mxu0 %v488
    %556 = vmatpush1.msra.mxu0 %v487
    %557 = vmatprep.subr.mxu0 %v492
    %558 = vmatpush1.msra.mxu0 %v491
    %559 = vmatprep.mubr.f32.mxu0 %v82
    %560 = vmatmul.mubr.f32.gmra.mrb[0].mxu0 %v81
    %v561 = vpop.f32.mrb[0].mxu0
    %v562 = vadd.f32 0.0, %v561
    %v563 = vpop.f32.mrb[0].mxu0
    %v564 = vadd.f32 0.0, %v563
    %565 = vmatprep.mubr.f32.mxu0 %v84
    %566 = vmatmul.mubr.f32.gmra.mrb[0].mxu0 %v83
    %v567 = vpop.f32.mrb[0].mxu0
    %v568 = vadd.f32 0.0, %v567
    %v569 = vpop.f32.mrb[0].mxu0
    %v570 = vadd.f32 0.0, %v569
    %571 = vdwg.mxu0
    %572 = vmatprep.subr.mxu0 %v370
    %573 = vmatpush1.msra.mxu0 %v369
    %574 = vmatprep.subr.mxu0 %v374
    %575 = vmatpush1.msra.mxu0 %v373
    %576 = vmatprep.subr.mxu0 %v378
    %577 = vmatpush1.msra.mxu0 %v377
    %578 = vmatprep.subr.mxu0 %v382
    %579 = vmatpush1.msra.mxu0 %v381
    %580 = vmatprep.subr.mxu0 %v386
    %581 = vmatpush1.msra.mxu0 %v385
    %582 = vmatprep.subr.mxu0 %v390
    %583 = vmatpush1.msra.mxu0 %v389
    %584 = vmatprep.subr.mxu0 %v394
    %585 = vmatpush1.msra.mxu0 %v393
    %586 = vmatprep.subr.mxu0 %v398
    %587 = vmatpush1.msra.mxu0 %v397
    %588 = vmatprep.subr.mxu0 %v402
    %589 = vmatpush1.msra.mxu0 %v401
    %590 = vmatprep.subr.mxu0 %v406
    %591 = vmatpush1.msra.mxu0 %v405
    %592 = vmatprep.subr.mxu0 %v410
    %593 = vmatpush1.msra.mxu0 %v409
    %594 = vmatprep.subr.mxu0 %v414
    %595 = vmatpush1.msra.mxu0 %v413
    %596 = vmatprep.subr.mxu0 %v418
    %597 = vmatpush1.msra.mxu0 %v417
    %598 = vmatprep.subr.mxu0 %v422
    %599 = vmatpush1.msra.mxu0 %v421
    %600 = vmatprep.subr.mxu0 %v426
    %601 = vmatpush1.msra.mxu0 %v425
    %602 = vmatprep.subr.mxu0 %v430
    %603 = vmatpush1.msra.mxu0 %v429
    %604 = vmatprep.subr.mxu0 %v434
    %605 = vmatpush1.msra.mxu0 %v433
    %606 = vmatprep.subr.mxu0 %v438
    %607 = vmatpush1.msra.mxu0 %v437
    %608 = vmatprep.subr.mxu0 %v442
    %609 = vmatpush1.msra.mxu0 %v441
    %610 = vmatprep.subr.mxu0 %v446
    %611 = vmatpush1.msra.mxu0 %v445
    %612 = vmatprep.subr.mxu0 %v450
    %613 = vmatpush1.msra.mxu0 %v449
    %614 = vmatprep.subr.mxu0 %v454
    %615 = vmatpush1.msra.mxu0 %v453
    %616 = vmatprep.subr.mxu0 %v458
    %617 = vmatpush1.msra.mxu0 %v457
    %618 = vmatprep.subr.mxu0 %v462
    %619 = vmatpush1.msra.mxu0 %v461
    %620 = vmatprep.subr.mxu0 %v466
    %621 = vmatpush1.msra.mxu0 %v465
    %622 = vmatprep.subr.mxu0 %v470
    %623 = vmatpush1.msra.mxu0 %v469
    %624 = vmatprep.subr.mxu0 %v474
    %625 = vmatpush1.msra.mxu0 %v473
    %626 = vmatprep.subr.mxu0 %v478
    %627 = vmatpush1.msra.mxu0 %v477
    %628 = vmatprep.subr.mxu0 %v482
    %629 = vmatpush1.msra.mxu0 %v481
    %630 = vmatprep.subr.mxu0 %v486
    %631 = vmatpush1.msra.mxu0 %v485
    %632 = vmatprep.subr.mxu0 %v490
    %633 = vmatpush1.msra.mxu0 %v489
    %634 = vmatprep.subr.mxu0 %v494
    %635 = vmatpush1.msra.mxu0 %v493
    %636 = vmatprep.mubr.f32.mxu0 %v82
    %637 = vmatmul.mubr.f32.gmra.mrb[0].mxu0 %v81
    %v638 = vpop.f32.mrb[0].mxu0
    %v639 = vadd.f32 0.0, %v638
    %v640 = vpop.f32.mrb[0].mxu0
    %v641 = vadd.f32 0.0, %v640
    %642 = vmatprep.mubr.f32.mxu0 %v84
    %643 = vmatmul.mubr.f32.gmra.mrb[0].mxu0 %v83
    %v644 = vpop.f32.mrb[0].mxu0
    %v645 = vadd.f32 0.0, %v644
    %v646 = vpop.f32.mrb[0].mxu0
    %v647 = vadd.f32 0.0, %v646
    %648 = vdwg.mxu0
    %v649 = vxor.u32 %v280, 2147483648
    %v650 = vxor.u32 %v282, 2147483648
    %v651 = vxor.u32 %v357, 2147483648
    %v652 = vxor.u32 %v359, 2147483648
    %v653 = vxor.u32 %v286, 2147483648
    %v654 = vxor.u32 %v288, 2147483648
    %v655 = vxor.u32 %v363, 2147483648
    %v656 = vxor.u32 %v365, 2147483648
    %v657 = vmul.f32 %v649, 1.442695
    %v658 = vpow.pop %v657
    %v659 = vmul.f32 %v650, 1.442695
    %v660 = vpow.pop %v659
    %v661 = vmul.f32 %v651, 1.442695
    %v662 = vpow.pop %v661
    %v663 = vmul.f32 %v652, 1.442695
    %v664 = vpow.pop %v663
    %v665 = vmul.f32 %v653, 1.442695
    %v666 = vpow.pop %v665
    %v667 = vmul.f32 %v654, 1.442695
    %v668 = vpow.pop %v667
    %v669 = vmul.f32 %v655, 1.442695
    %v670 = vpow.pop %v669
    %v671 = vmul.f32 %v656, 1.442695
    %v672 = vpow.pop %v671
    %v673 = vadd.f32 %v658, 1.0
    %v674 = vadd.f32 %v660, 1.0
    %v675 = vadd.f32 %v662, 1.0
    %v676 = vadd.f32 %v664, 1.0
    %v677 = vadd.f32 %v666, 1.0
    %v678 = vadd.f32 %v668, 1.0
    %v679 = vadd.f32 %v670, 1.0
    %v680 = vadd.f32 %v672, 1.0
    %v681 = vrcp.pop %v673
    %v682 = vmul.f32 1.0, %v681
    %v683 = vrcp.pop %v674
    %v684 = vmul.f32 1.0, %v683
    %v685 = vrcp.pop %v675
    %v686 = vmul.f32 1.0, %v685
    %v687 = vrcp.pop %v676
    %v688 = vmul.f32 1.0, %v687
    %v689 = vrcp.pop %v677
    %v690 = vmul.f32 1.0, %v689
    %v691 = vrcp.pop %v678
    %v692 = vmul.f32 1.0, %v691
    %v693 = vrcp.pop %v679
    %v694 = vmul.f32 1.0, %v693
    %v695 = vrcp.pop %v680
    %v696 = vmul.f32 1.0, %v695
    %v697 = vmul.f32 %v280, %v682
    %v698 = vmul.f32 %v282, %v684
    %v699 = vmul.f32 %v357, %v686
    %v700 = vmul.f32 %v359, %v688
    %v701 = vmul.f32 %v286, %v690
    %v702 = vmul.f32 %v288, %v692
    %v703 = vmul.f32 %v363, %v694
    %v704 = vmul.f32 %v365, %v696
    %v705 = vmul.f32 %v697, %v562
    %v706 = vmul.f32 %v698, %v564
    %v707 = vmul.f32 %v699, %v639
    %v708 = vmul.f32 %v700, %v641
    %v709 = vmul.f32 %v701, %v568
    %v710 = vmul.f32 %v702, %v570
    %v711 = vmul.f32 %v703, %v645
    %v712 = vmul.f32 %v704, %v647
    %v713 = vld [vmem:[#allocation2] sm:$0xff]
    %v714 = vld [vmem:[#allocation2 + $0x8] sm:$0xff]
    %v715 = vld [vmem:[#allocation2 + $0x10] sm:$0xff]
    %v716 = vld [vmem:[#allocation2 + $0x18] sm:$0xff]
    %v717 = vld [vmem:[#allocation9] sm:$0xff]
    %v718 = vld [vmem:[#allocation9 + $0x8] sm:$0xff]
    %v719 = vld [vmem:[#allocation9 + $0x10] sm:$0xff]
    %v720 = vld [vmem:[#allocation9 + $0x18] sm:$0xff]
    %v721 = vld [vmem:[#allocation9 + $0x20] sm:$0xff]
    %v722 = vld [vmem:[#allocation9 + $0x28] sm:$0xff]
    %v723 = vld [vmem:[#allocation9 + $0x30] sm:$0xff]
    %v724 = vld [vmem:[#allocation9 + $0x38] sm:$0xff]
    %v725 = vld [vmem:[#allocation9 + $0x40] sm:$0xff]
    %v726 = vld [vmem:[#allocation9 + $0x48] sm:$0xff]
    %v727 = vld [vmem:[#allocation9 + $0x50] sm:$0xff]
    %v728 = vld [vmem:[#allocation9 + $0x58] sm:$0xff]
    %v729 = vld [vmem:[#allocation9 + $0x60] sm:$0xff]
    %v730 = vld [vmem:[#allocation9 + $0x68] sm:$0xff]
    %v731 = vld [vmem:[#allocation9 + $0x70] sm:$0xff]
    %v732 = vld [vmem:[#allocation9 + $0x78] sm:$0xff]
    %v733 = vld [vmem:[#allocation9 + $0x80] sm:$0xff]
    %v734 = vld [vmem:[#allocation9 + $0x88] sm:$0xff]
    %v735 = vld [vmem:[#allocation9 + $0x90] sm:$0xff]
    %v736 = vld [vmem:[#allocation9 + $0x98] sm:$0xff]
    %v737 = vld [vmem:[#allocation9 + $0xa0] sm:$0xff]
    %v738 = vld [vmem:[#allocation9 + $0xa8] sm:$0xff]
    %v739 = vld [vmem:[#allocation9 + $0xb0] sm:$0xff]
    %v740 = vld [vmem:[#allocation9 + $0xb8] sm:$0xff]
    %v741 = vld [vmem:[#allocation9 + $0xc0] sm:$0xff]
    %v742 = vld [vmem:[#allocation9 + $0xc8] sm:$0xff]
    %v743 = vld [vmem:[#allocation9 + $0xd0] sm:$0xff]
    %v744 = vld [vmem:[#allocation9 + $0xd8] sm:$0xff]
    %v745 = vld [vmem:[#allocation9 + $0xe0] sm:$0xff]
    %v746 = vld [vmem:[#allocation9 + $0xe8] sm:$0xff]
    %v747 = vld [vmem:[#allocation9 + $0xf0] sm:$0xff]
    %v748 = vld [vmem:[#allocation9 + $0xf8] sm:$0xff]
    %v749 = vld [vmem:[#allocation9 + $0x100] sm:$0xff]
    %v750 = vld [vmem:[#allocation9 + $0x108] sm:$0xff]
    %v751 = vld [vmem:[#allocation9 + $0x110] sm:$0xff]
    %v752 = vld [vmem:[#allocation9 + $0x118] sm:$0xff]
    %v753 = vld [vmem:[#allocation9 + $0x120] sm:$0xff]
    %v754 = vld [vmem:[#allocation9 + $0x128] sm:$0xff]
    %v755 = vld [vmem:[#allocation9 + $0x130] sm:$0xff]
    %v756 = vld [vmem:[#allocation9 + $0x138] sm:$0xff]
    %v757 = vld [vmem:[#allocation9 + $0x140] sm:$0xff]
    %v758 = vld [vmem:[#allocation9 + $0x148] sm:$0xff]
    %v759 = vld [vmem:[#allocation9 + $0x150] sm:$0xff]
    %v760 = vld [vmem:[#allocation9 + $0x158] sm:$0xff]
    %v761 = vld [vmem:[#allocation9 + $0x160] sm:$0xff]
    %v762 = vld [vmem:[#allocation9 + $0x168] sm:$0xff]
    %v763 = vld [vmem:[#allocation9 + $0x170] sm:$0xff]
    %v764 = vld [vmem:[#allocation9 + $0x178] sm:$0xff]
    %v765 = vld [vmem:[#allocation9 + $0x180] sm:$0xff]
    %v766 = vld [vmem:[#allocation9 + $0x188] sm:$0xff]
    %v767 = vld [vmem:[#allocation9 + $0x190] sm:$0xff]
    %v768 = vld [vmem:[#allocation9 + $0x198] sm:$0xff]
    %v769 = vld [vmem:[#allocation9 + $0x1a0] sm:$0xff]
    %v770 = vld [vmem:[#allocation9 + $0x1a8] sm:$0xff]
    %v771 = vld [vmem:[#allocation9 + $0x1b0] sm:$0xff]
    %v772 = vld [vmem:[#allocation9 + $0x1b8] sm:$0xff]
    %v773 = vld [vmem:[#allocation9 + $0x1c0] sm:$0xff]
    %v774 = vld [vmem:[#allocation9 + $0x1c8] sm:$0xff]
    %v775 = vld [vmem:[#allocation9 + $0x1d0] sm:$0xff]
    %v776 = vld [vmem:[#allocation9 + $0x1d8] sm:$0xff]
    %v777 = vld [vmem:[#allocation9 + $0x1e0] sm:$0xff]
    %v778 = vld [vmem:[#allocation9 + $0x1e8] sm:$0xff]
    %v779 = vld [vmem:[#allocation9 + $0x1f0] sm:$0xff]
    %v780 = vld [vmem:[#allocation9 + $0x1f8] sm:$0xff]
    %v781 = vld [vmem:[#allocation9 + $0x200] sm:$0xff]
    %v782 = vld [vmem:[#allocation9 + $0x208] sm:$0xff]
    %v783 = vld [vmem:[#allocation9 + $0x210] sm:$0xff]
    %v784 = vld [vmem:[#allocation9 + $0x218] sm:$0xff]
    %v785 = vld [vmem:[#allocation9 + $0x220] sm:$0xff]
    %v786 = vld [vmem:[#allocation9 + $0x228] sm:$0xff]
    %v787 = vld [vmem:[#allocation9 + $0x230] sm:$0xff]
    %v788 = vld [vmem:[#allocation9 + $0x238] sm:$0xff]
    %v789 = vld [vmem:[#allocation9 + $0x240] sm:$0xff]
    %v790 = vld [vmem:[#allocation9 + $0x248] sm:$0xff]
    %v791 = vld [vmem:[#allocation9 + $0x250] sm:$0xff]
    %v792 = vld [vmem:[#allocation9 + $0x258] sm:$0xff]
    %v793 = vld [vmem:[#allocation9 + $0x260] sm:$0xff]
    %v794 = vld [vmem:[#allocation9 + $0x268] sm:$0xff]
    %v795 = vld [vmem:[#allocation9 + $0x270] sm:$0xff]
    %v796 = vld [vmem:[#allocation9 + $0x278] sm:$0xff]
    %v797 = vld [vmem:[#allocation9 + $0x280] sm:$0xff]
    %v798 = vld [vmem:[#allocation9 + $0x288] sm:$0xff]
    %v799 = vld [vmem:[#allocation9 + $0x290] sm:$0xff]
    %v800 = vld [vmem:[#allocation9 + $0x298] sm:$0xff]
    %v801 = vld [vmem:[#allocation9 + $0x2a0] sm:$0xff]
    %v802 = vld [vmem:[#allocation9 + $0x2a8] sm:$0xff]
    %v803 = vld [vmem:[#allocation9 + $0x2b0] sm:$0xff]
    %v804 = vld [vmem:[#allocation9 + $0x2b8] sm:$0xff]
    %v805 = vld [vmem:[#allocation9 + $0x2c0] sm:$0xff]
    %v806 = vld [vmem:[#allocation9 + $0x2c8] sm:$0xff]
    %v807 = vld [vmem:[#allocation9 + $0x2d0] sm:$0xff]
    %v808 = vld [vmem:[#allocation9 + $0x2d8] sm:$0xff]
    %v809 = vld [vmem:[#allocation9 + $0x2e0] sm:$0xff]
    %v810 = vld [vmem:[#allocation9 + $0x2e8] sm:$0xff]
    %v811 = vld [vmem:[#allocation9 + $0x2f0] sm:$0xff]
    %v812 = vld [vmem:[#allocation9 + $0x2f8] sm:$0xff]
    %v813 = vld [vmem:[#allocation9 + $0x300] sm:$0xff]
    %v814 = vld [vmem:[#allocation9 + $0x308] sm:$0xff]
    %v815 = vld [vmem:[#allocation9 + $0x310] sm:$0xff]
    %v816 = vld [vmem:[#allocation9 + $0x318] sm:$0xff]
    %v817 = vld [vmem:[#allocation9 + $0x320] sm:$0xff]
    %v818 = vld [vmem:[#allocation9 + $0x328] sm:$0xff]
    %v819 = vld [vmem:[#allocation9 + $0x330] sm:$0xff]
    %v820 = vld [vmem:[#allocation9 + $0x338] sm:$0xff]
    %v821 = vld [vmem:[#allocation9 + $0x340] sm:$0xff]
    %v822 = vld [vmem:[#allocation9 + $0x348] sm:$0xff]
    %v823 = vld [vmem:[#allocation9 + $0x350] sm:$0xff]
    %v824 = vld [vmem:[#allocation9 + $0x358] sm:$0xff]
    %v825 = vld [vmem:[#allocation9 + $0x360] sm:$0xff]
    %v826 = vld [vmem:[#allocation9 + $0x368] sm:$0xff]
    %v827 = vld [vmem:[#allocation9 + $0x370] sm:$0xff]
    %v828 = vld [vmem:[#allocation9 + $0x378] sm:$0xff]
    %v829 = vld [vmem:[#allocation9 + $0x380] sm:$0xff]
    %v830 = vld [vmem:[#allocation9 + $0x388] sm:$0xff]
    %v831 = vld [vmem:[#allocation9 + $0x390] sm:$0xff]
    %v832 = vld [vmem:[#allocation9 + $0x398] sm:$0xff]
    %v833 = vld [vmem:[#allocation9 + $0x3a0] sm:$0xff]
    %v834 = vld [vmem:[#allocation9 + $0x3a8] sm:$0xff]
    %v835 = vld [vmem:[#allocation9 + $0x3b0] sm:$0xff]
    %v836 = vld [vmem:[#allocation9 + $0x3b8] sm:$0xff]
    %v837 = vld [vmem:[#allocation9 + $0x3c0] sm:$0xff]
    %v838 = vld [vmem:[#allocation9 + $0x3c8] sm:$0xff]
    %v839 = vld [vmem:[#allocation9 + $0x3d0] sm:$0xff]
    %v840 = vld [vmem:[#allocation9 + $0x3d8] sm:$0xff]
    %v841 = vld [vmem:[#allocation9 + $0x3e0] sm:$0xff]
    %v842 = vld [vmem:[#allocation9 + $0x3e8] sm:$0xff]
    %v843 = vld [vmem:[#allocation9 + $0x3f0] sm:$0xff]
    %v844 = vld [vmem:[#allocation9 + $0x3f8] sm:$0xff]
    %845 = vmatprep.subr.mxu0 %v718
    %846 = vmatpush1.msra.mxu0 %v717
    %847 = vmatprep.subr.mxu0 %v720
    %848 = vmatpush1.msra.mxu0 %v719
    %849 = vmatprep.subr.mxu0 %v722
    %850 = vmatpush1.msra.mxu0 %v721
    %851 = vmatprep.subr.mxu0 %v724
    %852 = vmatpush1.msra.mxu0 %v723
    %853 = vmatprep.subr.mxu0 %v726
    %854 = vmatpush1.msra.mxu0 %v725
    %855 = vmatprep.subr.mxu0 %v728
    %856 = vmatpush1.msra.mxu0 %v727
    %857 = vmatprep.subr.mxu0 %v730
    %858 = vmatpush1.msra.mxu0 %v729
    %859 = vmatprep.subr.mxu0 %v732
    %860 = vmatpush1.msra.mxu0 %v731
    %861 = vmatprep.subr.mxu0 %v734
    %862 = vmatpush1.msra.mxu0 %v733
    %863 = vmatprep.subr.mxu0 %v736
    %864 = vmatpush1.msra.mxu0 %v735
    %865 = vmatprep.subr.mxu0 %v738
    %866 = vmatpush1.msra.mxu0 %v737
    %867 = vmatprep.subr.mxu0 %v740
    %868 = vmatpush1.msra.mxu0 %v739
    %869 = vmatprep.subr.mxu0 %v742
    %870 = vmatpush1.msra.mxu0 %v741
    %871 = vmatprep.subr.mxu0 %v744
    %872 = vmatpush1.msra.mxu0 %v743
    %873 = vmatprep.subr.mxu0 %v746
    %874 = vmatpush1.msra.mxu0 %v745
    %875 = vmatprep.subr.mxu0 %v748
    %876 = vmatpush1.msra.mxu0 %v747
    %877 = vmatprep.subr.mxu0 %v750
    %878 = vmatpush1.msra.mxu0 %v749
    %879 = vmatprep.subr.mxu0 %v752
    %880 = vmatpush1.msra.mxu0 %v751
    %881 = vmatprep.subr.mxu0 %v754
    %882 = vmatpush1.msra.mxu0 %v753
    %883 = vmatprep.subr.mxu0 %v756
    %884 = vmatpush1.msra.mxu0 %v755
    %885 = vmatprep.subr.mxu0 %v758
    %886 = vmatpush1.msra.mxu0 %v757
    %887 = vmatprep.subr.mxu0 %v760
    %888 = vmatpush1.msra.mxu0 %v759
    %889 = vmatprep.subr.mxu0 %v762
    %890 = vmatpush1.msra.mxu0 %v761
    %891 = vmatprep.subr.mxu0 %v764
    %892 = vmatpush1.msra.mxu0 %v763
    %893 = vmatprep.subr.mxu0 %v766
    %894 = vmatpush1.msra.mxu0 %v765
    %895 = vmatprep.subr.mxu0 %v768
    %896 = vmatpush1.msra.mxu0 %v767
    %897 = vmatprep.subr.mxu0 %v770
    %898 = vmatpush1.msra.mxu0 %v769
    %899 = vmatprep.subr.mxu0 %v772
    %900 = vmatpush1.msra.mxu0 %v771
    %901 = vmatprep.subr.mxu0 %v774
    %902 = vmatpush1.msra.mxu0 %v773
    %903 = vmatprep.subr.mxu0 %v776
    %904 = vmatpush1.msra.mxu0 %v775
    %905 = vmatprep.subr.mxu0 %v778
    %906 = vmatpush1.msra.mxu0 %v777
    %907 = vmatprep.subr.mxu0 %v780
    %908 = vmatpush1.msra.mxu0 %v779
    %909 = vmatprep.mubr.f32.mxu0 %v706
    %910 = vmatmul.mubr.f32.gmra.mrb[0].mxu0 %v705
    %v911 = vpop.f32.mrb[0].mxu0
    %v912 = vadd.f32 0.0, %v911
    %v913 = vpop.f32.mrb[0].mxu0
    %v914 = vadd.f32 0.0, %v913
    %915 = vmatprep.mubr.f32.mxu0 %v710
    %916 = vmatmul.mubr.f32.gmra.mrb[0].mxu0 %v709
    %v917 = vpop.f32.mrb[0].mxu0
    %v918 = vadd.f32 0.0, %v917
    %v919 = vpop.f32.mrb[0].mxu0
    %v920 = vadd.f32 0.0, %v919
    %921 = vdwg.mxu0
    %922 = vmatprep.subr.mxu0 %v782
    %923 = vmatpush1.msra.mxu0 %v781
    %924 = vmatprep.subr.mxu0 %v784
    %925 = vmatpush1.msra.mxu0 %v783
    %926 = vmatprep.subr.mxu0 %v786
    %927 = vmatpush1.msra.mxu0 %v785
    %928 = vmatprep.subr.mxu0 %v788
    %929 = vmatpush1.msra.mxu0 %v787
    %930 = vmatprep.subr.mxu0 %v790
    %931 = vmatpush1.msra.mxu0 %v789
    %932 = vmatprep.subr.mxu0 %v792
    %933 = vmatpush1.msra.mxu0 %v791
    %934 = vmatprep.subr.mxu0 %v794
    %935 = vmatpush1.msra.mxu0 %v793
    %936 = vmatprep.subr.mxu0 %v796
    %937 = vmatpush1.msra.mxu0 %v795
    %938 = vmatprep.subr.mxu0 %v798
    %939 = vmatpush1.msra.mxu0 %v797
    %940 = vmatprep.subr.mxu0 %v800
    %941 = vmatpush1.msra.mxu0 %v799
    %942 = vmatprep.subr.mxu0 %v802
    %943 = vmatpush1.msra.mxu0 %v801
    %944 = vmatprep.subr.mxu0 %v804
    %945 = vmatpush1.msra.mxu0 %v803
    %946 = vmatprep.subr.mxu0 %v806
    %947 = vmatpush1.msra.mxu0 %v805
    %948 = vmatprep.subr.mxu0 %v808
    %949 = vmatpush1.msra.mxu0 %v807
    %950 = vmatprep.subr.mxu0 %v810
    %951 = vmatpush1.msra.mxu0 %v809
    %952 = vmatprep.subr.mxu0 %v812
    %953 = vmatpush1.msra.mxu0 %v811
    %954 = vmatprep.subr.mxu0 %v814
    %955 = vmatpush1.msra.mxu0 %v813
    %956 = vmatprep.subr.mxu0 %v816
    %957 = vmatpush1.msra.mxu0 %v815
    %958 = vmatprep.subr.mxu0 %v818
    %959 = vmatpush1.msra.mxu0 %v817
    %960 = vmatprep.subr.mxu0 %v820
    %961 = vmatpush1.msra.mxu0 %v819
    %962 = vmatprep.subr.mxu0 %v822
    %963 = vmatpush1.msra.mxu0 %v821
    %964 = vmatprep.subr.mxu0 %v824
    %965 = vmatpush1.msra.mxu0 %v823
    %966 = vmatprep.subr.mxu0 %v826
    %967 = vmatpush1.msra.mxu0 %v825
    %968 = vmatprep.subr.mxu0 %v828
    %969 = vmatpush1.msra.mxu0 %v827
    %970 = vmatprep.subr.mxu0 %v830
    %971 = vmatpush1.msra.mxu0 %v829
    %972 = vmatprep.subr.mxu0 %v832
    %973 = vmatpush1.msra.mxu0 %v831
    %974 = vmatprep.subr.mxu0 %v834
    %975 = vmatpush1.msra.mxu0 %v833
    %976 = vmatprep.subr.mxu0 %v836
    %977 = vmatpush1.msra.mxu0 %v835
    %978 = vmatprep.subr.mxu0 %v838
    %979 = vmatpush1.msra.mxu0 %v837
    %980 = vmatprep.subr.mxu0 %v840
    %981 = vmatpush1.msra.mxu0 %v839
    %982 = vmatprep.subr.mxu0 %v842
    %983 = vmatpush1.msra.mxu0 %v841
    %984 = vmatprep.subr.mxu0 %v844
    %985 = vmatpush1.msra.mxu0 %v843
    %986 = vmatprep.mubr.f32.mxu0 %v708
    %987 = vmatmul.mubr.f32.gmra.mrb[0].mxu0 %v707
    %v988 = vpop.f32.mrb[0].mxu0
    %v989 = vadd.f32 %v912, %v988
    %v990 = vpop.f32.mrb[0].mxu0
    %v991 = vadd.f32 %v914, %v990
    %992 = vmatprep.mubr.f32.mxu0 %v712
    %993 = vmatmul.mubr.f32.gmra.mrb[0].mxu0 %v711
    %v994 = vpop.f32.mrb[0].mxu0
    %v995 = vadd.f32 %v918, %v994
    %v996 = vpop.f32.mrb[0].mxu0
    %v997 = vadd.f32 %v920, %v996
    %998 = vdwg.mxu0
    %v999 = vadd.f32 %v713, %v989
    %v1000 = vadd.f32 %v714, %v991
    %v1001 = vadd.f32 %v715, %v995
    %v1002 = vadd.f32 %v716, %v997
    %1003 = vst [vmem:[#allocation2] sm:$0xff] %v999
    %1004 = vst [vmem:[#allocation2 + $0x8] sm:$0xff] %v1000
    %1005 = vst [vmem:[#allocation2 + $0x10] sm:$0xff] %v1001
    %1006 = vst [vmem:[#allocation2 + $0x18] sm:$0xff] %v1002
    // Predicated region
    $region38: #{tpu_custom_call.1} parent=1 // pred_check
      %p1007 = pneg %p73
    $region39: #{tpu_custom_call.1} parent=1 // pred_check_branch
      %1009 = sbr.rel (%p1007) target = $region41
    $region40: #{tpu_custom_call.1} parent=1 // pred_region
      %v1010 = vld [vmem:[#allocation2] sm:$0xff]
      %v1011 = vld [vmem:[#allocation2 + $0x8] sm:$0xff]
      %v1012 = vld [vmem:[#allocation2 + $0x10] sm:$0xff]
      %v1013 = vld [vmem:[#allocation2 + $0x18] sm:$0xff]
      %1014 = vst [vmem:[#allocation11] sm:$0xff] %v1010
      %1015 = vst [vmem:[#allocation11 + $0x8] sm:$0xff] %v1011
      %1016 = vst [vmem:[#allocation11 + $0x10] sm:$0xff] %v1012
      %1017 = vst [vmem:[#allocation11 + $0x18] sm:$0xff] %v1013
    $region41: #{tpu_custom_call.1} parent=1 // pred_fallthru
      _
    // Predicated region
    $region42: #{tpu_custom_call.1} parent=1 // pred_check
      _
    $region43: #{tpu_custom_call.1} parent=1 // pred_check_branch
      %1019 = sbr.rel (0) target = $region45
    $region44: #{tpu_custom_call.1} parent=1 // pred_region
      %s1021 = ssub.s32 512, 512
      %1022 = vsyncadd [#allocation5], %s1021
      %s1023 = sshll.u32 [#allocation11], 4
      %s1024 = int_to_ptr.vmem [resolvable:$true] %s1023
      %1029 = dma.vmem_to_hbm [thread:$0]  %s1024, 512, %s4, [#allocation5], 256, 256, 16
    $region45: #{tpu_custom_call.1} parent=1 // pred_fallthru
      _
    // Predicated region
    $region46: #{tpu_custom_call.1} parent=1 // pred_check
      _
    $region47: #{tpu_custom_call.1} parent=1 // pred_check_branch
      %1031 = sbr.rel (0) target = $region49
    $region48: #{tpu_custom_call.1} parent=1 // pred_region
      %1032 = dma.done [#allocation5], 512
    $region49: #{tpu_custom_call.1} parent=1 // pred_fallthru
      _
    %1033 = vsyncpa [#allocation4], 1
    %1034 = vsyncpa [#allocation7], 1
    %1035 = vsyncpa [#allocation10], 1
    %1036 = vsyncpa [#allocation5], 1

</llo_original>
